<compile_context>
chip_gen: v7x
topology: tpu7x:2x2x1
jax: 0.10.0
libtpu: 0.0.40
codegen_flags: <defaults>
</compile_context>

<pallas_src>
import math

import jax
import jax.numpy as jnp
from jax.experimental import pallas as pl
from jax.experimental.pallas import tpu as pltpu

_SHIFT = math.log(2.0)
_LANE = 128
_TARGET_TILE_BYTES = 4 * 1024 * 1024    # ~4 MiB per buffer
_VMEM_LIMIT_BYTES = 32 * 1024 * 1024    # explicit scoped-VMEM limit


def _shifted_softplus_kernel(x_ref, o_ref):
    # Load in the input dtype (keeps HBM traffic narrow), compute in f32.
    x = x_ref[...].astype(jnp.float32)
    # Numerically stable softplus: max(x, 0) + log1p(exp(-|x|))
    sp = jnp.maximum(x, 0.0) + jnp.log1p(jnp.exp(-jnp.abs(x)))
    o_ref[...] = (sp - _SHIFT).astype(o_ref.dtype)


def _pick_lane_width(total):
    """Largest lane-dense width (multiple of 128) that divides `total`."""
    for w in (4096, 2048, 1024, 512, 256, 128):
        if total % w == 0:
            return w
    return None


def _run_slab(flat, rows, w, dtype):
    """Run the kernel on a contiguous (rows, w) slab; returns flat output."""
    x2 = flat.reshape(rows, w)
    itemsize = jnp.dtype(dtype).itemsize

    # Sublane packing: 8 rows/vreg for 32-bit, 16 for 16-bit, 32 for 8-bit.
    sub = max(8, 32 // max(1, itemsize))

    # Byte-sized row tile (~4 MiB per buffer), rounded to the sublane packing.
    tm = max(sub, (_TARGET_TILE_BYTES // (w * itemsize)) // sub * sub)

    # Guarantee >= 2 grid steps when rows allow, so v7x's two TensorCores
    # both get work (neutral on v5e/v6e, where the grid is a serial loop).
    if rows >= 2 * sub:
        half = max(sub, (pl.cdiv(rows, 2) // sub) * sub)
        tm = min(tm, half)

    tm = min(tm, rows)  # block equal to the full extent is always legal
    grid = (pl.cdiv(rows, tm),)

    out = pl.pallas_call(
        _shifted_softplus_kernel,
        out_shape=jax.ShapeDtypeStruct((rows, w), dtype),
        grid_spec=pltpu.PrefetchScalarGridSpec(
            num_scalar_prefetch=0,
            grid=grid,
            in_specs=[pl.BlockSpec((tm, w), lambda i: (i, 0))],
            out_specs=pl.BlockSpec((tm, w), lambda i: (i, 0)),
        ),
        compiler_params=pltpu.CompilerParams(
            dimension_semantics=("parallel",),
            vmem_limit_bytes=_VMEM_LIMIT_BYTES,
        ),
        # Scheduling hint: pure mem-bound op, 2 transcendentals/elem.
        cost_estimate=pl.CostEstimate(
            flops=3 * rows * w,
            transcendentals=2 * rows * w,
            bytes_accessed=2 * rows * w * itemsize,
        ),
    )(x2)
    return out.reshape(-1)


def shifted_softplus(x):
    """softplus(x) - log(2), elementwise, via a Pallas TPU kernel.

    Accepts any shape; internally reshaped to a lane-dense (rows, W) slab
    with W a multiple of 128, then reshaped back.  If no lane-dense width
    divides the element count, the kernel handles the largest 128-divisible
    prefix and the small tail is computed in plain JAX (no pad/slice copies).
    """
    orig_shape = x.shape
    dtype = x.dtype
    total = x.size
    if total == 0:
        return x

    flat = x.reshape(-1)

    w = _pick_lane_width(total)
    if w is not None:
        return _run_slab(flat, total // w, w, dtype).reshape(orig_shape)

    # Fallback: kernel on the largest 128-divisible prefix, plain JAX tail.
    w = _LANE
    for cand in (4096, 2048, 1024, 512, 256, 128):
        if total >= cand:
            w = cand
            break
    main = (total // w) * w

    if main == 0:
        # Tiny tensor (< 128 elements): not worth a kernel launch.
        out = jax.nn.softplus(flat.astype(jnp.float32)) - _SHIFT
        return out.astype(dtype).reshape(orig_shape)

    head = _run_slab(flat[:main], main // w, w, dtype)
    tail = jax.nn.softplus(flat[main:].astype(jnp.float32)) - _SHIFT
    out_flat = jnp.concatenate([head, tail.astype(dtype)])
    return out_flat.reshape(orig_shape)


if __name__ == "__main__":
    key = jax.random.PRNGKey(0)

    # SchNet applies ShiftedSoftplus to hidden activations, e.g. (num_nodes, hidden)
    x = jax.random.normal(key, (8, 32), dtype=jnp.float32) * 3.0
    y_ref = jax.nn.softplus(x) - math.log(2.0)
    y = jax.block_until_ready(shifted_softplus(x))
    assert y.shape == x.shape and y.dtype == x.dtype
    assert jnp.allclose(y, y_ref, atol=1e-6), "mismatch vs reference (main path)"

    # Exercise the prefix+tail fallback path (element count not 128-divisible).
    x2 = jax.random.normal(jax.random.PRNGKey(1), (5, 37), dtype=jnp.float32) * 3.0
    y2_ref = jax.nn.softplus(x2) - math.log(2.0)
    y2 = jax.block_until_ready(shifted_softplus(x2))
    assert y2.shape == x2.shape and y2.dtype == x2.dtype
    assert jnp.allclose(y2, y2_ref, atol=1e-6), "mismatch vs reference (fallback path)"

    print("KERNEL_OK")
</pallas_src>

<mosaic_0001>
module attributes {stable_mosaic.version = 11 : i64} {
  func.func @_shifted_softplus_kernel(%arg0: i32, %arg1: memref<1x256xf32, #tpu.memory_space<vmem>>, %arg2: memref<1x256xf32, #tpu.memory_space<vmem>>) attributes {dimension_semantics = [#tpu.dimension_semantics<parallel>], iteration_bounds = array<i64: 1>, scalar_prefetch = 0 : i64, scratch_operands = 0 : i64, tpu.core_type = #tpu.core_type<tc>, window_params = [{transform_indices = @transform_0, window_bounds = array<i64: 1, 256>}, {transform_indices = @transform_1, window_bounds = array<i64: 1, 256>}]} {
    %c0 = arith.constant 0 : index
    %c0_0 = arith.constant 0 : index
    %0 = vector.load %arg1[%c0, %c0_0] : memref<1x256xf32, #tpu.memory_space<vmem>>, vector<1x256xf32>
    %cst = arith.constant 0.000000e+00 : f32
    %1 = vector.broadcast %cst : f32 to vector<1x256xf32>
    %2 = arith.maximumf %0, %1 : vector<1x256xf32>
    %3 = math.absf %0 : vector<1x256xf32>
    %cst_1 = arith.constant 0.000000e+00 : f32
    %4 = vector.broadcast %cst_1 : f32 to vector<1x256xf32>
    %5 = arith.subf %4, %3 : vector<1x256xf32>
    %6 = math.exp %5 : vector<1x256xf32>
    %7 = math.log1p %6 : vector<1x256xf32>
    %8 = arith.addf %2, %7 : vector<1x256xf32>
    %cst_2 = arith.constant 0.693147182 : f32
    %9 = vector.broadcast %cst_2 : f32 to vector<1x256xf32>
    %10 = arith.subf %8, %9 : vector<1x256xf32>
    %c0_3 = arith.constant 0 : index
    %c0_4 = arith.constant 0 : index
    %11 = vector.load %arg2[%c0_3, %c0_4] : memref<1x256xf32, #tpu.memory_space<vmem>>, vector<1x256xf32>
    tpu.vector_store %arg2[%c0_3, %c0_4], %10 {strides = array<i32>} : memref<1x256xf32, #tpu.memory_space<vmem>>, vector<1x256xf32>,
    return
  }
  func.func @transform_0(%arg0: i32) -> (i32, i32) {
    %c0_i32 = arith.constant 0 : i32
    %c0_i32_0 = arith.constant 0 : i32
    return %arg0, %c0_i32 : i32, i32
  }
  func.func @transform_1(%arg0: i32) -> (i32, i32) {
    %c0_i32 = arith.constant 0 : i32
    %c0_i32_0 = arith.constant 0 : i32
    return %arg0, %c0_i32 : i32, i32
  }
}

</mosaic_0001>

<llo_original>
// kernel: tpu_custom_call.1
$region0: #{tpu_custom_call.1}
  #allocation0 [shape = 'u32[]', space=smem, size = 0x4, offset = 0x4, fixed_abs, tag = 'smem constant byte address 0x4 - core index']
  #allocation1 [shape = 'u32[144,128]{1,0:T(1,128)}', space=vmem, size = 0x12000, scoped, tag = 'internal scratch']
  %s0 = inlined_call_operand.hbm [shape: f32[1,256], index: 0, kind: input, shape index: {}]
  %s1 = inlined_call_operand.hbm [shape: f32[1,256], index: 1, kind: output, shape index: {}]
  %s2 = sld [smem:[#allocation0]]
  $region18: #{tpu_custom_call.1} parent=0
    _
  %s4 = ssub.s32 1, %s2
  %s5 = scalar_select 0, %s4, %s2
  $region1: #{tpu_custom_call.1} parent=0
    #allocation2 [shape = 'u8[1024]{0}', space=vmem, size = 0x400, scoped, tag = 'input window, operand 0, single buffered']
    #allocation3 [shape = 's32[1]{0}', space=sflag, size = 0x4, scoped, tag = 'scoped memory for tpu_custom_call.1']
    #allocation4 [shape = 's32[1]{0}', space=sflag, size = 0x4, scoped, tag = 'scoped memory for tpu_custom_call.1']
    #allocation5 [shape = 'u8[1024]{0}', space=vmem, size = 0x400, scoped, tag = 'output window, operand 0, single buffered']
    %6 = vsyncpa [#allocation3], 0
    %7 = vsyncpa [#allocation4], 0
    // Predicated region
    $region2: #{tpu_custom_call.1} parent=1 // pred_check
      _
    $region3: #{tpu_custom_call.1} parent=1 // pred_check_branch
      %9 = sbr.rel (0) target = $region5
    $region4: #{tpu_custom_call.1} parent=1 // pred_region
      %s11 = ssub.s32 32, 32
      %12 = vsyncadd [#allocation3], %s11
      %s14 = sshll.u32 [#allocation2], 4
      %s15 = int_to_ptr.vmem [resolvable:$true] %s14
      %17 = dma.hbm_to_vmem [thread:$0]  %s0, 32, %s15, [#allocation3]
    $region5: #{tpu_custom_call.1} parent=1 // pred_fallthru
      _
    // Predicated region
    $region6: #{tpu_custom_call.1} parent=1 // pred_check
      _
    $region7: #{tpu_custom_call.1} parent=1 // pred_check_branch
      %19 = sbr.rel (0) target = $region9
    $region8: #{tpu_custom_call.1} parent=1 // pred_region
      %20 = dma.done [#allocation3], 32
    $region9: #{tpu_custom_call.1} parent=1 // pred_fallthru
      _
    %v21 = vld [vmem:[#allocation2] sm:$0x3]
    %v22 = vmax.f32 %v21, 0.0
    %v23 = vand.u32 2147483647, %v21
    %v24 = vsub.f32 0.0, %v23
    %v25 = vmul.f32 %v24, 1.442695
    %v26 = vpow.pop %v25
    %v27 = vadd.f32 %v26, 1.0
    %v28 = vlog2.pop %v27
    %v29 = vmul.f32 %v28, 0.6931472
    %v30 = vmul.f32 -0.5, %v26
    %v31 = vadd.f32 %v30, 1.0
    %v32 = vmul.f32 %v31, %v26
    %v33 = vand.u32 2147483647, %v26
    %vm34 = vcmp.lt.f32.partialorder %v33, 0.0004427343
    %v35 = vsel %vm34, %v32, %v29
    %v36 = vadd.f32 %v22, %v35
    %v37 = vsub.f32 %v36, 0.6931472
    %v38 = vlaneseq
    %vm39 = vcmp.ge.s32.totalorder %v38, 0
    %vm40 = vcmp.lt.s32.totalorder %v38, 256
    %vm41 = vmand %vm39, %vm40
    %42 = vst.msk [vmem:[#allocation5] sm:$0x3] %vm41, %v37
    // Predicated region
    $region10: #{tpu_custom_call.1} parent=1 // pred_check
      _
    $region11: #{tpu_custom_call.1} parent=1 // pred_check_branch
      %44 = sbr.rel (0) target = $region13
    $region12: #{tpu_custom_call.1} parent=1 // pred_region
      %s46 = ssub.s32 32, 32
      %47 = vsyncadd [#allocation4], %s46
      %s49 = sshll.u32 [#allocation5], 4
      %s50 = int_to_ptr.vmem [resolvable:$true] %s49
      %52 = dma.vmem_to_hbm [thread:$0]  %s50, 32, %s1, [#allocation4]
    $region13: #{tpu_custom_call.1} parent=1 // pred_fallthru
      _
    // Predicated region
    $region14: #{tpu_custom_call.1} parent=1 // pred_check
      _
    $region15: #{tpu_custom_call.1} parent=1 // pred_check_branch
      %54 = sbr.rel (0) target = $region17
    $region16: #{tpu_custom_call.1} parent=1 // pred_region
      %55 = dma.done [#allocation4], 32
    $region17: #{tpu_custom_call.1} parent=1 // pred_fallthru
      _
    %56 = vsyncpa [#allocation3], 1
    %57 = vsyncpa [#allocation4], 1

</llo_original>
